<compile_context>
chip_gen: v7x
topology: tpu7x:2x2x1
jax: 0.10.0
libtpu: 0.0.40
codegen_flags: <defaults>
</compile_context>

<pallas_src>
import functools

import jax
import jax.numpy as jnp
from jax.experimental import pallas as pl
from jax.experimental.pallas import tpu as pltpu


def _round_up(x, m):
    return ((x + m - 1) // m) * m


def _slab_layout(seq_len, z_dim, hidden):
    """Row layout of the packed weight slab. Every section start is 8-aligned."""
    seq_pad = _round_up(seq_len, 8)
    zdim_pad = _round_up(z_dim, 8)
    o_w1x = 0
    o_w1z = seq_pad
    o_b1 = seq_pad + zdim_pad
    o_w2 = o_b1 + 8
    o_b2 = o_w2 + hidden
    o_w3 = o_b2 + 8
    rows = o_w3 + 8
    return seq_pad, zdim_pad, (o_w1x, o_w1z, o_b1, o_w2, o_b2, o_w3), rows


def init_answer_infomax_params(key, seq_len, nza, nzadim, hidden=128):
    """Deterministic init mirroring nn.Linear's U(-1/sqrt(fan_in), 1/sqrt(fan_in)).

    All weights are packed (in_features, out_features)-major into a single
    (rows, hidden) f32 slab so the kernel performs one weight DMA and slices it
    with static, sublane-aligned views.  w3 is stored as a (1, hidden) row for
    the VPU multiply + lane-reduce final layer.
    """
    x_dim = seq_len
    z_dim = nza * nzadim

    def linear(k, fan_in, fan_out):
        kw, kb = jax.random.split(k)
        bound = 1.0 / jnp.sqrt(jnp.float32(fan_in))
        w = jax.random.uniform(kw, (fan_in, fan_out), jnp.float32, -bound, bound)
        b = jax.random.uniform(kb, (1, fan_out), jnp.float32, -bound, bound)
        return w, b

    k1, k2, k3 = jax.random.split(key, 3)
    w1, b1 = linear(k1, x_dim + z_dim, hidden)
    w2, b2 = linear(k2, hidden, hidden)
    w3, b3 = linear(k3, hidden, 1)

    seq_pad, zdim_pad, offs, rows = _slab_layout(x_dim, z_dim, hidden)
    o_w1x, o_w1z, o_b1, o_w2, o_b2, o_w3 = offs
    slab = jnp.zeros((rows, hidden), jnp.float32)
    slab = slab.at[o_w1x:o_w1x + x_dim].set(w1[:x_dim])     # zero-padded rows beyond
    slab = slab.at[o_w1z:o_w1z + z_dim].set(w1[x_dim:])     # seq_len / z_dim match the
    slab = slab.at[o_b1:o_b1 + 1].set(b1)                   # zero-padded input columns
    slab = slab.at[o_w2:o_w2 + hidden].set(w2)
    slab = slab.at[o_b2:o_b2 + 1].set(b2)
    slab = slab.at[o_w3:o_w3 + 1].set(w3.reshape(1, hidden))
    # b3 is kept for module parity only: it cancels exactly in the DV bound,
    #   mean(s + b3) - log(mean(exp(s + b3))) == mean(s) - log(mean(exp(s))).
    return {"w_slab": slab, "b3": b3.reshape(())}


def _mine_tiled_kernel(x_ref, z_ref, zn_ref, w_ref, mi_ref,
                       sum_ref, m_ref, l_ref,
                       *, n, offs, matmul_dtype):
    """One batch tile of the fused MINE statistics net + streaming DV reduction."""
    i = pl.program_id(0)
    tile = x_ref.shape[0]            # static, multiple of 8
    seq_pad = x_ref.shape[1]
    zdim_pad = z_ref.shape[1]
    hidden = w_ref.shape[1]
    o_w1x, o_w1z, o_b1, o_w2, o_b2, o_w3 = offs

    @pl.when(i == 0)
    def _init():
        sum_ref[...] = jnp.zeros_like(sum_ref)
        m_ref[...] = jnp.full_like(m_ref, -jnp.inf)
        l_ref[...] = jnp.zeros_like(l_ref)

    # Static, 8-aligned views into the VMEM-resident packed weight slab.
    w1x = w_ref[o_w1x:o_w1x + seq_pad, :]
    w1z = w_ref[o_w1z:o_w1z + zdim_pad, :]
    b1 = w_ref[o_b1:o_b1 + 1, :]
    w2 = w_ref[o_w2:o_w2 + hidden, :]
    b2 = w_ref[o_b2:o_b2 + 1, :]
    w3 = w_ref[o_w3:o_w3 + 1, :]

    x = x_ref[...].astype(jnp.float32)     # in-kernel int32 -> f32 cast (ids stay f32)
    z = z_ref[...]
    zn = zn_ref[...]

    # Layer 1: [x; z] @ W1 expressed as x @ W1x + z @ W1z (no lane concat); the
    # x-side matmul is shared between joint and marginal rows.
    hx = jnp.dot(x, w1x, preferred_element_type=jnp.float32)
    hz = jnp.dot(z, w1z, preferred_element_type=jnp.float32)
    hzn = jnp.dot(zn, w1z, preferred_element_type=jnp.float32)

    # Stack joint + marginal rows; `tile` is a multiple of 8 so the axis-0 concat
    # is sublane-aligned (no XLU retile copies).
    h1 = jnp.maximum(jnp.concatenate([hx + hz, hx + hzn], axis=0) + b1, 0.0)

    # Layer 2: one stacked (2T, H) x (H, H) matmul. Optional bf16 operands
    # (f32 accumulation) for the v6e/v7x MXU fast path.
    h2 = jnp.dot(h1.astype(matmul_dtype), w2.astype(matmul_dtype),
                 preferred_element_type=jnp.float32) + b2
    h2 = jnp.maximum(h2, 0.0)

    # Validity mask for zero-padded batch rows.
    row_ids = i * tile + jax.lax.broadcasted_iota(jnp.int32, (tile, 1), 0)
    valid = row_ids < n

    # Layer 3 (single output column): VPU multiply against the (1, H) weight row.
    # Joint half: one fused full reduce straight into the running sum.
    pos_partial = jnp.sum(jnp.where(valid, h2[:tile] * w3, 0.0), keepdims=True)  # (1,1)
    sum_ref[...] += pos_partial

    # Marginal half: per-row T only here (needed for the streaming logsumexp).
    t_marg = jnp.sum(h2[tile:] * w3, axis=-1, keepdims=True)                     # (T,1)
    t_marg = jnp.where(valid, t_marg, -jnp.inf)
    m_old = m_ref[...]
    m_new = jnp.maximum(m_old, jnp.max(t_marg, axis=0, keepdims=True))
    l_ref[...] = (l_ref[...] * jnp.exp(m_old - m_new)
                  + jnp.sum(jnp.exp(t_marg - m_new), axis=0, keepdims=True))
    m_ref[...] = m_new

    @pl.when(i == pl.num_programs(0) - 1)
    def _finalize():
        # Donsker-Varadhan bound (b3 cancels exactly, see init).
        pos = sum_ref[...] * (1.0 / n)
        neg = m_ref[...] + jnp.log(l_ref[...] * (1.0 / n))
        mi_ref[...] = pos - neg


def answer_latent_dim_mutual_info_max(params, a_ids, za, *,
                                      batch_tile=512,
                                      matmul_dtype=jnp.float32):
    """Forward pass of AnswerLatentDimMutualInfoMax (infomax_type='deep').

    a_ids: (N, seq_len) integer token ids
    za:    (N, nza, nzadim) latent samples
    batch_tile: rows per grid step (multiple of 8; halve on v7x).
    matmul_dtype: jnp.bfloat16 enables the v6e/v7x MXU fast path for layer 2.
    Returns a scalar MI lower-bound estimate (f32). Requires N >= 2.
    """
    n, seq_len = a_ids.shape
    assert n >= 2, "MINE DV bound needs at least 2 samples"
    z = za.reshape(n, -1).astype(jnp.float32)          # za.view(N, -1)
    z_dim = z.shape[1]
    slab = params["w_slab"]
    hidden = slab.shape[1]
    seq_pad, zdim_pad, offs, rows = _slab_layout(seq_len, z_dim, hidden)
    assert slab.shape[0] == rows, "weight slab does not match (seq_len, z_dim, hidden)"

    # Deterministic whole-batch rotate-by-1 marginal pairing (randperm stand-in).
    # Passed as its own tiled stream: the roll crosses tile boundaries, which a
    # standard BlockSpec index_map cannot express; the extra (N, z_dim) read is tiny.
    z_neg = jnp.roll(z, shift=1, axis=0)

    # Batch tiling (sublane-aligned).
    tile = min(_round_up(batch_tile, 8), _round_up(n, 8))
    num_tiles = (n + tile - 1) // tile
    n_pad = num_tiles * tile

    def pad2d(arr, r, c):
        pr, pc = r - arr.shape[0], c - arr.shape[1]
        if pr == 0 and pc == 0:
            return arr
        return jnp.pad(arr, ((0, pr), (0, pc)))

    x_p = pad2d(a_ids.astype(jnp.int32), n_pad, seq_pad)
    z_p = pad2d(z, n_pad, zdim_pad)
    zn_p = pad2d(z_neg, n_pad, zdim_pad)

    # Cost hint for XLA scheduling around the custom call.
    flops = (2 * n_pad * seq_pad * hidden            # x @ W1x
             + 4 * n_pad * zdim_pad * hidden         # z / z_neg @ W1z
             + 4 * n_pad * hidden * hidden           # stacked layer-2
             + 8 * n_pad * hidden)                   # bias / relu / final row mul
    bytes_accessed = 4 * (x_p.size + z_p.size + zn_p.size + slab.size + 1)
    cost = pl.CostEstimate(flops=flops,
                           transcendentals=n_pad + 2 * num_tiles,
                           bytes_accessed=bytes_accessed)

    # Explicit VMEM budget: double-buffered input tiles + resident weights + activations.
    in_tile_bytes = 4 * tile * (seq_pad + 2 * zdim_pad)
    act_bytes = 4 * 2 * tile * hidden
    working = 2 * in_tile_bytes + 4 * slab.size + 4 * act_bytes
    vmem_limit = int(min(100 * 2**20, max(8 * 2**20, 2 * working)))

    kernel = functools.partial(_mine_tiled_kernel, n=n, offs=offs,
                               matmul_dtype=matmul_dtype)

    mi = pl.pallas_call(
        kernel,
        grid=(num_tiles,),
        in_specs=[
            pl.BlockSpec((tile, seq_pad), lambda i: (i, 0)),
            pl.BlockSpec((tile, zdim_pad), lambda i: (i, 0)),
            pl.BlockSpec((tile, zdim_pad), lambda i: (i, 0)),
            pl.BlockSpec(slab.shape, lambda i: (0, 0)),      # constant -> VMEM-resident
        ],
        out_specs=pl.BlockSpec((1, 1), lambda i: (0, 0)),
        out_shape=jax.ShapeDtypeStruct((1, 1), jnp.float32),
        scratch_shapes=[pltpu.VMEM((1, 1), jnp.float32)] * 3,  # sum, running max, sum-exp
        compiler_params=pltpu.CompilerParams(
            dimension_semantics=("arbitrary",),               # streaming reduction axis
            vmem_limit_bytes=vmem_limit),
        cost_estimate=cost,
    )(x_p, z_p, zn_p, slab)
    return mi[0, 0]


if __name__ == "__main__":
    # Small shapes consistent with the module's forward:
    #   a_ids: (N, seq_len), za: (N, nza, nzadim)
    N, seq_len, nza, nzadim = 8, 32, 4, 8

    key = jax.random.PRNGKey(0)
    k_params, k_ids, k_za = jax.random.split(key, 3)

    params = init_answer_infomax_params(k_params, seq_len, nza, nzadim, hidden=128)
    a_ids = jax.random.randint(k_ids, (N, seq_len), 0, 100, dtype=jnp.int32)
    za = jax.random.normal(k_za, (N, nza, nzadim), dtype=jnp.float32)

    mi_estimate = answer_latent_dim_mutual_info_max(params, a_ids, za)
    jax.block_until_ready(mi_estimate)
    assert mi_estimate.shape == () and bool(jnp.isfinite(mi_estimate))

    # Also exercise the padding / row-mask path with a non-multiple-of-8 batch.
    a_ids2 = jax.random.randint(k_ids, (10, seq_len), 0, 100, dtype=jnp.int32)
    za2 = jax.random.normal(k_za, (10, nza, nzadim), dtype=jnp.float32)
    mi2 = answer_latent_dim_mutual_info_max(params, a_ids2, za2)
    jax.block_until_ready(mi2)
    assert bool(jnp.isfinite(mi2))

    print("KERNEL_OK")
</pallas_src>

<mosaic_0001>
module attributes {stable_mosaic.version = 11 : i64} {
  func.func @_mine_tiled_kernel(%arg0: i32, %arg1: memref<8x32xi32, #tpu.memory_space<vmem>>, %arg2: memref<8x32xf32, #tpu.memory_space<vmem>>, %arg3: memref<8x32xf32, #tpu.memory_space<vmem>>, %arg4: memref<216x128xf32, #tpu.memory_space<vmem>>, %arg5: memref<1x1xf32, #tpu.memory_space<vmem>>, %arg6: memref<1x1xf32, #tpu.memory_space<vmem>>, %arg7: memref<1x1xf32, #tpu.memory_space<vmem>>, %arg8: memref<1x1xf32, #tpu.memory_space<vmem>>) attributes {dimension_semantics = [#tpu.dimension_semantics<arbitrary>], iteration_bounds = array<i64: 1>, scalar_prefetch = 0 : i64, scratch_operands = 3 : i64, tpu.core_type = #tpu.core_type<tc>, window_params = [{transform_indices = @transform_0, window_bounds = array<i64: 8, 32>}, {transform_indices = @transform_1, window_bounds = array<i64: 8, 32>}, {transform_indices = @transform_2, window_bounds = array<i64: 8, 32>}, {pipeline_mode = #tpu.pipeline_mode<synchronous>, transform_indices = @transform_3, window_bounds = array<i64: 216, 128>}, {pipeline_mode = #tpu.pipeline_mode<synchronous>, transform_indices = @transform_4, window_bounds = array<i64: 1, 1>}]} {
    %c0_i32 = arith.constant 0 : i32
    %0 = arith.cmpi eq, %arg0, %c0_i32 : i32
    %1 = arith.extui %0 : i1 to i32
    %c0_i32_0 = arith.constant 0 : i32
    %2 = arith.cmpi ne, %1, %c0_i32_0 : i32
    scf.if %2 {
      %cst_39 = arith.constant 0.000000e+00 : f32
      %75 = vector.broadcast %cst_39 : f32 to vector<1x1xf32>
      %c0_40 = arith.constant 0 : index
      %c0_41 = arith.constant 0 : index
      %76 = vector.load %arg6[%c0_40, %c0_41] : memref<1x1xf32, #tpu.memory_space<vmem>>, vector<1x1xf32>
      tpu.vector_store %arg6[%c0_40, %c0_41], %75 {strides = array<i32>} : memref<1x1xf32, #tpu.memory_space<vmem>>, vector<1x1xf32>,
      %cst_42 = arith.constant 0xFF800000 : f32
      %77 = vector.broadcast %cst_42 : f32 to vector<1x1xf32>
      %c0_43 = arith.constant 0 : index
      %c0_44 = arith.constant 0 : index
      %78 = vector.load %arg7[%c0_43, %c0_44] : memref<1x1xf32, #tpu.memory_space<vmem>>, vector<1x1xf32>
      tpu.vector_store %arg7[%c0_43, %c0_44], %77 {strides = array<i32>} : memref<1x1xf32, #tpu.memory_space<vmem>>, vector<1x1xf32>,
      %cst_45 = arith.constant 0.000000e+00 : f32
      %79 = vector.broadcast %cst_45 : f32 to vector<1x1xf32>
      %c0_46 = arith.constant 0 : index
      %c0_47 = arith.constant 0 : index
      %80 = vector.load %arg8[%c0_46, %c0_47] : memref<1x1xf32, #tpu.memory_space<vmem>>, vector<1x1xf32>
      tpu.vector_store %arg8[%c0_46, %c0_47], %79 {strides = array<i32>} : memref<1x1xf32, #tpu.memory_space<vmem>>, vector<1x1xf32>,
    } else {
    }
    %c0 = arith.constant 0 : index
    %c0_1 = arith.constant 0 : index
    %3 = vector.load %arg4[%c0, %c0_1] : memref<216x128xf32, #tpu.memory_space<vmem>>, vector<32x128xf32>
    %c32 = arith.constant 32 : index
    %c0_2 = arith.constant 0 : index
    %4 = vector.load %arg4[%c32, %c0_2] : memref<216x128xf32, #tpu.memory_space<vmem>>, vector<32x128xf32>
    %c64 = arith.constant 64 : index
    %c0_3 = arith.constant 0 : index
    %5 = vector.load %arg4[%c64, %c0_3] : memref<216x128xf32, #tpu.memory_space<vmem>>, vector<1x128xf32>
    %c72 = arith.constant 72 : index
    %c0_4 = arith.constant 0 : index
    %6 = vector.load %arg4[%c72, %c0_4] : memref<216x128xf32, #tpu.memory_space<vmem>>, vector<128x128xf32>
    %c200 = arith.constant 200 : index
    %c0_5 = arith.constant 0 : index
    %7 = vector.load %arg4[%c200, %c0_5] : memref<216x128xf32, #tpu.memory_space<vmem>>, vector<1x128xf32>
    %c208 = arith.constant 208 : index
    %c0_6 = arith.constant 0 : index
    %8 = vector.load %arg4[%c208, %c0_6] : memref<216x128xf32, #tpu.memory_space<vmem>>, vector<1x128xf32>
    %c0_7 = arith.constant 0 : index
    %c0_8 = arith.constant 0 : index
    %9 = vector.load %arg1[%c0_7, %c0_8] : memref<8x32xi32, #tpu.memory_space<vmem>>, vector<8x32xi32>
    %10 = arith.sitofp %9 : vector<8x32xi32> to vector<8x32xf32>
    %c0_9 = arith.constant 0 : index
    %c0_10 = arith.constant 0 : index
    %11 = vector.load %arg2[%c0_9, %c0_10] : memref<8x32xf32, #tpu.memory_space<vmem>>, vector<8x32xf32>
    %c0_11 = arith.constant 0 : index
    %c0_12 = arith.constant 0 : index
    %12 = vector.load %arg3[%c0_11, %c0_12] : memref<8x32xf32, #tpu.memory_space<vmem>>, vector<8x32xf32>
    %cst = arith.constant dense<0.000000e+00> : vector<8x128xf32>
    %13 = tpu.matmul %10, %3, %cst {dimension_numbers = #tpu.dot_dimension_numbers<[1], [0], [0], [1], [0, 0, 1, 1], [], []>} : vector<8x32xf32>, vector<32x128xf32>, vector<8x128xf32> -> vector<8x128xf32>
    %cst_13 = arith.constant dense<0.000000e+00> : vector<8x128xf32>
    %14 = tpu.matmul %11, %4, %cst_13 {dimension_numbers = #tpu.dot_dimension_numbers<[1], [0], [0], [1], [0, 0, 1, 1], [], []>} : vector<8x32xf32>, vector<32x128xf32>, vector<8x128xf32> -> vector<8x128xf32>
    %cst_14 = arith.constant dense<0.000000e+00> : vector<8x128xf32>
    %15 = tpu.matmul %12, %4, %cst_14 {dimension_numbers = #tpu.dot_dimension_numbers<[1], [0], [0], [1], [0, 0, 1, 1], [], []>} : vector<8x32xf32>, vector<32x128xf32>, vector<8x128xf32> -> vector<8x128xf32>
    %16 = arith.addf %13, %14 : vector<8x128xf32>
    %17 = arith.addf %13, %15 : vector<8x128xf32>
    %18 = tpu.concatenate %16, %17 in 0 : vector<8x128xf32>, vector<8x128xf32> -> vector<16x128xf32>
    %19 = vector.broadcast %5 : vector<1x128xf32> to vector<16x128xf32>
    %20 = arith.addf %18, %19 : vector<16x128xf32>
    %cst_15 = arith.constant 0.000000e+00 : f32
    %21 = vector.broadcast %cst_15 : f32 to vector<16x128xf32>
    %22 = arith.maximumf %20, %21 : vector<16x128xf32>
    %cst_16 = arith.constant dense<0.000000e+00> : vector<16x128xf32>
    %23 = tpu.matmul %22, %6, %cst_16 {dimension_numbers = #tpu.dot_dimension_numbers<[1], [0], [0], [1], [0, 0, 1, 1], [], []>} : vector<16x128xf32>, vector<128x128xf32>, vector<16x128xf32> -> vector<16x128xf32>
    %24 = vector.broadcast %7 : vector<1x128xf32> to vector<16x128xf32>
    %25 = arith.addf %23, %24 : vector<16x128xf32>
    %cst_17 = arith.constant 0.000000e+00 : f32
    %26 = vector.broadcast %cst_17 : f32 to vector<16x128xf32>
    %27 = arith.maximumf %25, %26 : vector<16x128xf32>
    %c8_i32 = arith.constant 8 : i32
    %28 = arith.muli %arg0, %c8_i32 : i32
    %29 = tpu.iota {dimensions = array<i32: 0>} : vector<8x1xi32>
    %30 = vector.broadcast %28 : i32 to vector<8x1xi32>
    %31 = arith.addi %30, %29 : vector<8x1xi32>
    %c8_i32_18 = arith.constant 8 : i32
    %32 = vector.broadcast %c8_i32_18 : i32 to vector<8x1xi32>
    %33 = arith.cmpi slt, %31, %32 : vector<8x1xi32>
    %34 = vector.extract_strided_slice %27 {offsets = [0, 0], sizes = [8, 128], strides = [1, 1]} : vector<16x128xf32> to vector<8x128xf32>
    %35 = vector.broadcast %8 : vector<1x128xf32> to vector<8x128xf32>
    %36 = arith.mulf %34, %35 : vector<8x128xf32>
    %cst_19 = arith.constant 0.000000e+00 : f32
    %37 = vector.shape_cast %33 : vector<8x1xi1> to vector<8x1xi1>
    %38 = vector.broadcast %37 : vector<8x1xi1> to vector<8x128xi1>
    %39 = vector.broadcast %cst_19 : f32 to vector<8x128xf32>
    %40 = arith.select %38, %36, %39 : vector<8x128xi1>, vector<8x128xf32>
    %41 = vector.shape_cast %40 : vector<8x128xf32> to vector<1x8x128xf32>
    %cst_20 = arith.constant dense<0.000000e+00> : vector<1xf32>
    %42 = vector.multi_reduction <add>, %41, %cst_20 [1, 2] : vector<1x8x128xf32> to vector<1xf32>
    %43 = vector.shape_cast %42 : vector<1xf32> to vector<1x1x1xf32>
    %44 = vector.extract %43[0, 0, 0] : f32 from vector<1x1x1xf32>
    %45 = vector.broadcast %44 : f32 to vector<1x1xf32>
    %c0_21 = arith.constant 0 : index
    %c0_22 = arith.constant 0 : index
    %46 = vector.load %arg6[%c0_21, %c0_22] : memref<1x1xf32, #tpu.memory_space<vmem>>, vector<1x1xf32>
    %47 = arith.addf %46, %45 : vector<1x1xf32>
    %c0_23 = arith.constant 0 : index
    %c0_24 = arith.constant 0 : index
    %48 = vector.load %arg6[%c0_23, %c0_24] : memref<1x1xf32, #tpu.memory_space<vmem>>, vector<1x1xf32>
    tpu.vector_store %arg6[%c0_23, %c0_24], %47 {strides = array<i32>} : memref<1x1xf32, #tpu.memory_space<vmem>>, vector<1x1xf32>,
    %49 = vector.extract_strided_slice %27 {offsets = [8, 0], sizes = [8, 128], strides = [1, 1]} : vector<16x128xf32> to vector<8x128xf32>
    %50 = vector.broadcast %8 : vector<1x128xf32> to vector<8x128xf32>
    %51 = arith.mulf %49, %50 : vector<8x128xf32>
    %cst_25 = arith.constant dense<0.000000e+00> : vector<8xf32>
    %52 = vector.multi_reduction <add>, %51, %cst_25 [1] : vector<8x128xf32> to vector<8xf32>
    %53 = vector.shape_cast %52 : vector<8xf32> to vector<8x1xf32>
    %cst_26 = arith.constant 0xFF800000 : f32
    %54 = vector.broadcast %cst_26 : f32 to vector<8x1xf32>
    %55 = arith.select %33, %53, %54 : vector<8x1xi1>, vector<8x1xf32>
    %c0_27 = arith.constant 0 : index
    %c0_28 = arith.constant 0 : index
    %56 = vector.load %arg7[%c0_27, %c0_28] : memref<1x1xf32, #tpu.memory_space<vmem>>, vector<1x1xf32>
    %cst_29 = arith.constant dense<0xFF800000> : vector<1xf32>
    %57 = vector.multi_reduction <maximumf>, %55, %cst_29 [0] : vector<8x1xf32> to vector<1xf32>
    %58 = vector.shape_cast %57 : vector<1xf32> to vector<1x1xf32>
    %59 = arith.maximumf %56, %58 : vector<1x1xf32>
    %c0_30 = arith.constant 0 : index
    %c0_31 = arith.constant 0 : index
    %60 = vector.load %arg8[%c0_30, %c0_31] : memref<1x1xf32, #tpu.memory_space<vmem>>, vector<1x1xf32>
    %61 = arith.subf %56, %59 : vector<1x1xf32>
    %62 = math.exp %61 : vector<1x1xf32>
    %63 = arith.mulf %60, %62 : vector<1x1xf32>
    %64 = vector.broadcast %59 : vector<1x1xf32> to vector<8x1xf32>
    %65 = arith.subf %55, %64 : vector<8x1xf32>
    %66 = math.exp %65 : vector<8x1xf32>
    %cst_32 = arith.constant dense<0.000000e+00> : vector<1xf32>
    %67 = vector.multi_reduction <add>, %66, %cst_32 [0] : vector<8x1xf32> to vector<1xf32>
    %68 = vector.shape_cast %67 : vector<1xf32> to vector<1x1xf32>
    %69 = arith.addf %63, %68 : vector<1x1xf32>
    %c0_33 = arith.constant 0 : index
    %c0_34 = arith.constant 0 : index
    %70 = vector.load %arg8[%c0_33, %c0_34] : memref<1x1xf32, #tpu.memory_space<vmem>>, vector<1x1xf32>
    tpu.vector_store %arg8[%c0_33, %c0_34], %69 {strides = array<i32>} : memref<1x1xf32, #tpu.memory_space<vmem>>, vector<1x1xf32>,
    %c0_35 = arith.constant 0 : index
    %c0_36 = arith.constant 0 : index
    %71 = vector.load %arg7[%c0_35, %c0_36] : memref<1x1xf32, #tpu.memory_space<vmem>>, vector<1x1xf32>
    tpu.vector_store %arg7[%c0_35, %c0_36], %59 {strides = array<i32>} : memref<1x1xf32, #tpu.memory_space<vmem>>, vector<1x1xf32>,
    %c0_i32_37 = arith.constant 0 : i32
    %72 = arith.cmpi eq, %arg0, %c0_i32_37 : i32
    %73 = arith.extui %72 : i1 to i32
    %c0_i32_38 = arith.constant 0 : i32
    %74 = arith.cmpi ne, %73, %c0_i32_38 : i32
    scf.if %74 {
      %c0_39 = arith.constant 0 : index
      %c0_40 = arith.constant 0 : index
      %75 = vector.load %arg6[%c0_39, %c0_40] : memref<1x1xf32, #tpu.memory_space<vmem>>, vector<1x1xf32>
      %cst_41 = arith.constant 1.250000e-01 : f32
      %76 = vector.broadcast %cst_41 : f32 to vector<1x1xf32>
      %77 = arith.mulf %75, %76 : vector<1x1xf32>
      %c0_42 = arith.constant 0 : index
      %c0_43 = arith.constant 0 : index
      %78 = vector.load %arg7[%c0_42, %c0_43] : memref<1x1xf32, #tpu.memory_space<vmem>>, vector<1x1xf32>
      %c0_44 = arith.constant 0 : index
      %c0_45 = arith.constant 0 : index
      %79 = vector.load %arg8[%c0_44, %c0_45] : memref<1x1xf32, #tpu.memory_space<vmem>>, vector<1x1xf32>
      %cst_46 = arith.constant 1.250000e-01 : f32
      %80 = vector.broadcast %cst_46 : f32 to vector<1x1xf32>
      %81 = arith.mulf %79, %80 : vector<1x1xf32>
      %82 = math.log %81 : vector<1x1xf32>
      %83 = arith.addf %78, %82 : vector<1x1xf32>
      %84 = arith.subf %77, %83 : vector<1x1xf32>
      %c0_47 = arith.constant 0 : index
      %c0_48 = arith.constant 0 : index
      %85 = vector.load %arg5[%c0_47, %c0_48] : memref<1x1xf32, #tpu.memory_space<vmem>>, vector<1x1xf32>
      tpu.vector_store %arg5[%c0_47, %c0_48], %84 {strides = array<i32>} : memref<1x1xf32, #tpu.memory_space<vmem>>, vector<1x1xf32>,
    } else {
    }
    return
  }
  func.func @transform_0(%arg0: i32) -> (i32, i32) {
    %c0_i32 = arith.constant 0 : i32
    %c0_i32_0 = arith.constant 0 : i32
    return %arg0, %c0_i32 : i32, i32
  }
  func.func @transform_1(%arg0: i32) -> (i32, i32) {
    %c0_i32 = arith.constant 0 : i32
    %c0_i32_0 = arith.constant 0 : i32
    return %arg0, %c0_i32 : i32, i32
  }
  func.func @transform_2(%arg0: i32) -> (i32, i32) {
    %c0_i32 = arith.constant 0 : i32
    %c0_i32_0 = arith.constant 0 : i32
    return %arg0, %c0_i32 : i32, i32
  }
  func.func @transform_3(%arg0: i32) -> (i32, i32) {
    %c0_i32 = arith.constant 0 : i32
    %c0_i32_0 = arith.constant 0 : i32
    %c0_i32_1 = arith.constant 0 : i32
    return %c0_i32, %c0_i32_0 : i32, i32
  }
  func.func @transform_4(%arg0: i32) -> (i32, i32) {
    %c0_i32 = arith.constant 0 : i32
    %c0_i32_0 = arith.constant 0 : i32
    %c0_i32_1 = arith.constant 0 : i32
    return %c0_i32, %c0_i32_0 : i32, i32
  }
}

</mosaic_0001>

<llo_original>
// kernel: tpu_custom_call.1
$region0: #{tpu_custom_call.1}
  #allocation0 [shape = 'u32[]', space=smem, size = 0x4, offset = 0x4, fixed_abs, tag = 'smem constant byte address 0x4 - core index']
  #allocation1 [shape = 'u32[144,128]{1,0:T(1,128)}', space=vmem, size = 0x12000, scoped, tag = 'internal scratch']
  #allocation2 [shape = 'f32[1,1]{1,0:T(1,128)}', space=vmem, size = 0x200, scoped, tag = 'scratch operand']
  #allocation3 [shape = 'f32[1,1]{1,0:T(1,128)}', space=vmem, size = 0x200, scoped, tag = 'scratch operand']
  #allocation4 [shape = 'f32[1,1]{1,0:T(1,128)}', space=vmem, size = 0x200, scoped, tag = 'scratch operand']
  %s0 = inlined_call_operand.hbm [shape: s32[8,32], index: 0, kind: input, shape index: {}]
  %s1 = inlined_call_operand.hbm [shape: f32[8,32], index: 1, kind: input, shape index: {}]
  %s2 = inlined_call_operand.hbm [shape: f32[8,32], index: 2, kind: input, shape index: {}]
  %s3 = inlined_call_operand.hbm [shape: f32[216,128], index: 3, kind: input, shape index: {}]
  %s4 = inlined_call_operand.hbm [shape: f32[1,1], index: 4, kind: output, shape index: {}]
  %s5 = sld [smem:[#allocation0]]
  $region50: #{tpu_custom_call.1} parent=0
    _
  %s7 = ssub.s32 1, %s5
  %s8 = scalar_select 0, %s7, %s5
  $region1: #{tpu_custom_call.1} parent=0
    #allocation5 [shape = 'u8[4096]{0}', space=vmem, size = 0x1000, scoped, tag = 'input window, operand 0, single buffered']
    #allocation6 [shape = 's32[1]{0}', space=sflag, size = 0x4, scoped, tag = 'scoped memory for tpu_custom_call.1']
    #allocation7 [shape = 's32[1]{0}', space=sflag, size = 0x4, scoped, tag = 'scoped memory for tpu_custom_call.1']
    #allocation8 [shape = 'u8[4096]{0}', space=vmem, size = 0x1000, scoped, tag = 'input window, operand 1, single buffered']
    #allocation9 [shape = 's32[1]{0}', space=sflag, size = 0x4, scoped, tag = 'scoped memory for tpu_custom_call.1']
    #allocation10 [shape = 'u8[4096]{0}', space=vmem, size = 0x1000, scoped, tag = 'input window, operand 2, single buffered']
    #allocation11 [shape = 'u8[110592]{0}', space=vmem, size = 0x1b000, scoped, tag = 'input window, operand 3, single buffered']
    #allocation12 [shape = 's32[1]{0}', space=sflag, size = 0x4, scoped, tag = 'scoped memory for tpu_custom_call.1']
    #allocation13 [shape = 'u8[512]{0}', space=vmem, size = 0x400, scoped, tag = 'output window, operand 0, single buffered']
    %9 = vsyncpa [#allocation6], 0
    %10 = vsyncpa [#allocation9], 0
    %11 = vsyncpa [#allocation12], 0
    %12 = vsyncpa [#allocation7], 0
    // Predicated region
    $region2: #{tpu_custom_call.1} parent=1 // pred_check
      _
    $region3: #{tpu_custom_call.1} parent=1 // pred_check_branch
      %14 = sbr.rel (0) target = $region5
    $region4: #{tpu_custom_call.1} parent=1 // pred_region
      %s16 = ssub.s32 128, 128
      %17 = vsyncadd [#allocation6], %s16
      %s19 = sshll.u32 [#allocation5], 4
      %s20 = int_to_ptr.vmem [resolvable:$true] %s19
      %22 = dma.hbm_to_vmem [thread:$0]  %s0, 128, %s20, [#allocation6]
    $region5: #{tpu_custom_call.1} parent=1 // pred_fallthru
      _
    // Predicated region
    $region6: #{tpu_custom_call.1} parent=1 // pred_check
      _
    $region7: #{tpu_custom_call.1} parent=1 // pred_check_branch
      %24 = sbr.rel (0) target = $region9
    $region8: #{tpu_custom_call.1} parent=1 // pred_region
      %s26 = ssub.s32 128, 128
      %27 = vsyncadd [#allocation9], %s26
      %s29 = sshll.u32 [#allocation8], 4
      %s30 = int_to_ptr.vmem [resolvable:$true] %s29
      %32 = dma.hbm_to_vmem [thread:$0]  %s1, 128, %s30, [#allocation9]
    $region9: #{tpu_custom_call.1} parent=1 // pred_fallthru
      _
    // Predicated region
    $region10: #{tpu_custom_call.1} parent=1 // pred_check
      _
    $region11: #{tpu_custom_call.1} parent=1 // pred_check_branch
      %34 = sbr.rel (0) target = $region13
    $region12: #{tpu_custom_call.1} parent=1 // pred_region
      %s36 = ssub.s32 128, 128
      %37 = vsyncadd [#allocation9], %s36
      %s39 = sshll.u32 [#allocation10], 4
      %s40 = int_to_ptr.vmem [resolvable:$true] %s39
      %42 = dma.hbm_to_vmem [thread:$0]  %s2, 128, %s40, [#allocation9]
    $region13: #{tpu_custom_call.1} parent=1 // pred_fallthru
      _
    // Predicated region
    $region14: #{tpu_custom_call.1} parent=1 // pred_check
      _
    $region15: #{tpu_custom_call.1} parent=1 // pred_check_branch
      %44 = sbr.rel (0) target = $region17
    $region16: #{tpu_custom_call.1} parent=1 // pred_region
      %s46 = ssub.s32 3456, 3456
      %47 = vsyncadd [#allocation12], %s46
      %s48 = sshll.u32 [#allocation11], 4
      %s49 = int_to_ptr.vmem [resolvable:$true] %s48
      %54 = dma.hbm_to_vmem [thread:$0]  %s3, 3456, %s49, [#allocation12], 128, 128, 8
    $region17: #{tpu_custom_call.1} parent=1 // pred_fallthru
      _
    // Predicated region
    $region18: #{tpu_custom_call.1} parent=1 // pred_check
      _
    $region19: #{tpu_custom_call.1} parent=1 // pred_check_branch
      %56 = sbr.rel (0) target = $region21
    $region20: #{tpu_custom_call.1} parent=1 // pred_region
      %57 = dma.done [#allocation6], 128
    $region21: #{tpu_custom_call.1} parent=1 // pred_fallthru
      _
    // Predicated region
    $region22: #{tpu_custom_call.1} parent=1 // pred_check
      _
    $region23: #{tpu_custom_call.1} parent=1 // pred_check_branch
      %59 = sbr.rel (0) target = $region25
    $region24: #{tpu_custom_call.1} parent=1 // pred_region
      %60 = dma.done [#allocation9], 128
    $region25: #{tpu_custom_call.1} parent=1 // pred_fallthru
      _
    // Predicated region
    $region26: #{tpu_custom_call.1} parent=1 // pred_check
      _
    $region27: #{tpu_custom_call.1} parent=1 // pred_check_branch
      %62 = sbr.rel (0) target = $region29
    $region28: #{tpu_custom_call.1} parent=1 // pred_region
      %63 = dma.done [#allocation9], 128
    $region29: #{tpu_custom_call.1} parent=1 // pred_fallthru
      _
    // Predicated region
    $region30: #{tpu_custom_call.1} parent=1 // pred_check
      _
    $region31: #{tpu_custom_call.1} parent=1 // pred_check_branch
      %65 = sbr.rel (0) target = $region33
    $region32: #{tpu_custom_call.1} parent=1 // pred_region
      %66 = dma.done [#allocation12], 3456
    $region33: #{tpu_custom_call.1} parent=1 // pred_fallthru
      _
    %p67 = scmp.eq.s32.totalorder 0, 0
    // Predicated region
    $region34: #{tpu_custom_call.1} parent=1 // pred_check
      %p68 = pneg %p67
    $region35: #{tpu_custom_call.1} parent=1 // pred_check_branch
      %70 = sbr.rel (%p68) target = $region37
    $region36: #{tpu_custom_call.1} parent=1 // pred_region
      %vm71 = vcmask 0
      %72 = vst.msk [vmem:[#allocation2] sm:$0x1] %vm71, 0.0
      %73 = vst.msk [vmem:[#allocation3] sm:$0x1] %vm71, -inf
      %74 = vst.msk [vmem:[#allocation4] sm:$0x1] %vm71, 0.0
    $region37: #{tpu_custom_call.1} parent=1 // pred_fallthru
      _
    %v75 = vld [vmem:[#allocation11] sm:$0xff]
    %v76 = vld [vmem:[#allocation11 + $0x8] sm:$0xff]
    %v77 = vld [vmem:[#allocation11 + $0x10] sm:$0xff]
    %v78 = vld [vmem:[#allocation11 + $0x18] sm:$0xff]
    %v79 = vld [vmem:[#allocation11 + $0x20] sm:$0xff]
    %v80 = vld [vmem:[#allocation11 + $0x28] sm:$0xff]
    %v81 = vld [vmem:[#allocation11 + $0x30] sm:$0xff]
    %v82 = vld [vmem:[#allocation11 + $0x38] sm:$0xff]
    %v83 = vld [vmem:[#allocation11 + $0x40] sm:$0x1]
    %v84 = vld [vmem:[#allocation11 + $0x48] sm:$0xff]
    %v85 = vld [vmem:[#allocation11 + $0x50] sm:$0xff]
    %v86 = vld [vmem:[#allocation11 + $0x58] sm:$0xff]
    %v87 = vld [vmem:[#allocation11 + $0x60] sm:$0xff]
    %v88 = vld [vmem:[#allocation11 + $0x68] sm:$0xff]
    %v89 = vld [vmem:[#allocation11 + $0x70] sm:$0xff]
    %v90 = vld [vmem:[#allocation11 + $0x78] sm:$0xff]
    %v91 = vld [vmem:[#allocation11 + $0x80] sm:$0xff]
    %v92 = vld [vmem:[#allocation11 + $0x88] sm:$0xff]
    %v93 = vld [vmem:[#allocation11 + $0x90] sm:$0xff]
    %v94 = vld [vmem:[#allocation11 + $0x98] sm:$0xff]
    %v95 = vld [vmem:[#allocation11 + $0xa0] sm:$0xff]
    %v96 = vld [vmem:[#allocation11 + $0xa8] sm:$0xff]
    %v97 = vld [vmem:[#allocation11 + $0xb0] sm:$0xff]
    %v98 = vld [vmem:[#allocation11 + $0xb8] sm:$0xff]
    %v99 = vld [vmem:[#allocation11 + $0xc0] sm:$0xff]
    %v100 = vld [vmem:[#allocation11 + $0xc8] sm:$0x1]
    %v101 = vld [vmem:[#allocation11 + $0xd0] sm:$0x1]
    %v102 = vld [vmem:[#allocation5] sm:$0xff]
    %v103 = vcvt.s32.f32 %v102
    %v104 = vld [vmem:[#allocation8] sm:$0xff]
    %v105 = vld [vmem:[#allocation10] sm:$0xff]
    %vm106 = vcmask 261120
    %v108 = vsel %vm106, %v103, 0
    %110 = vmatprep.subr.mxu0 0.0
    %111 = vmatpush1.msra.mxu0 %v75
    %112 = vmatprep.subr.mxu0 0.0
    %113 = vmatpush1.msra.mxu0 %v76
    %114 = vmatprep.subr.mxu0 0.0
    %115 = vmatpush1.msra.mxu0 %v77
    %116 = vmatprep.subr.mxu0 0.0
    %117 = vmatpush1.msra.mxu0 %v78
    %118 = vmatprep.subr.mxu0 0.0
    %119 = vmatpush1.msra.mxu0 0.0
    %120 = vmatprep.subr.mxu0 0.0
    %121 = vmatpush1.msra.mxu0 0.0
    %122 = vmatprep.subr.mxu0 0.0
    %123 = vmatpush1.msra.mxu0 0.0
    %124 = vmatprep.subr.mxu0 0.0
    %125 = vmatpush1.msra.mxu0 0.0
    %126 = vmatprep.subr.mxu0 0.0
    %127 = vmatpush1.msra.mxu0 0.0
    %128 = vmatprep.subr.mxu0 0.0
    %129 = vmatpush1.msra.mxu0 0.0
    %130 = vmatprep.subr.mxu0 0.0
    %131 = vmatpush1.msra.mxu0 0.0
    %132 = vmatprep.subr.mxu0 0.0
    %133 = vmatpush1.msra.mxu0 0.0
    %134 = vmatprep.subr.mxu0 0.0
    %135 = vmatpush1.msra.mxu0 0.0
    %136 = vmatprep.subr.mxu0 0.0
    %137 = vmatpush1.msra.mxu0 0.0
    %138 = vmatprep.subr.mxu0 0.0
    %139 = vmatpush1.msra.mxu0 0.0
    %140 = vmatprep.subr.mxu0 0.0
    %141 = vmatpush1.msra.mxu0 0.0
    %142 = vmatprep.subr.mxu0 0.0
    %143 = vmatpush1.msra.mxu0 0.0
    %144 = vmatprep.subr.mxu0 0.0
    %145 = vmatpush1.msra.mxu0 0.0
    %146 = vmatprep.subr.mxu0 0.0
    %147 = vmatpush1.msra.mxu0 0.0
    %148 = vmatprep.subr.mxu0 0.0
    %149 = vmatpush1.msra.mxu0 0.0
    %150 = vmatprep.subr.mxu0 0.0
    %151 = vmatpush1.msra.mxu0 0.0
    %152 = vmatprep.subr.mxu0 0.0
    %153 = vmatpush1.msra.mxu0 0.0
    %154 = vmatprep.subr.mxu0 0.0
    %155 = vmatpush1.msra.mxu0 0.0
    %156 = vmatprep.subr.mxu0 0.0
    %157 = vmatpush1.msra.mxu0 0.0
    %158 = vmatprep.subr.mxu0 0.0
    %159 = vmatpush1.msra.mxu0 0.0
    %160 = vmatprep.subr.mxu0 0.0
    %161 = vmatpush1.msra.mxu0 0.0
    %162 = vmatprep.subr.mxu0 0.0
    %163 = vmatpush1.msra.mxu0 0.0
    %164 = vmatprep.subr.mxu0 0.0
    %165 = vmatpush1.msra.mxu0 0.0
    %166 = vmatprep.subr.mxu0 0.0
    %167 = vmatpush1.msra.mxu0 0.0
    %168 = vmatprep.subr.mxu0 0.0
    %169 = vmatpush1.msra.mxu0 0.0
    %170 = vmatprep.subr.mxu0 0.0
    %171 = vmatpush1.msra.mxu0 0.0
    %172 = vmatprep.subr.mxu0 0.0
    %173 = vmatpush1.msra.mxu0 0.0
    %174 = vmatprep.mubr.f32.mxu0 0.0
    %175 = vmatmul.mubr.f32.gmra.mrb[0].mxu0 %v108
    %v176 = vpop.f32.mrb[0].mxu0
    %v177 = vadd.f32 0.0, %v176
    %v178 = vpop.f32.mrb[0].mxu0
    %179 = vdwg.mxu0
    %v181 = vsel %vm106, %v104, 0
    %183 = vmatprep.subr.mxu0 0.0
    %184 = vmatpush1.msra.mxu0 %v79
    %185 = vmatprep.subr.mxu0 0.0
    %186 = vmatpush1.msra.mxu0 %v80
    %187 = vmatprep.subr.mxu0 0.0
    %188 = vmatpush1.msra.mxu0 %v81
    %189 = vmatprep.subr.mxu0 0.0
    %190 = vmatpush1.msra.mxu0 %v82
    %191 = vmatprep.subr.mxu0 0.0
    %192 = vmatpush1.msra.mxu0 0.0
    %193 = vmatprep.subr.mxu0 0.0
    %194 = vmatpush1.msra.mxu0 0.0
    %195 = vmatprep.subr.mxu0 0.0
    %196 = vmatpush1.msra.mxu0 0.0
    %197 = vmatprep.subr.mxu0 0.0
    %198 = vmatpush1.msra.mxu0 0.0
    %199 = vmatprep.subr.mxu0 0.0
    %200 = vmatpush1.msra.mxu0 0.0
    %201 = vmatprep.subr.mxu0 0.0
    %202 = vmatpush1.msra.mxu0 0.0
    %203 = vmatprep.subr.mxu0 0.0
    %204 = vmatpush1.msra.mxu0 0.0
    %205 = vmatprep.subr.mxu0 0.0
    %206 = vmatpush1.msra.mxu0 0.0
    %207 = vmatprep.subr.mxu0 0.0
    %208 = vmatpush1.msra.mxu0 0.0
    %209 = vmatprep.subr.mxu0 0.0
    %210 = vmatpush1.msra.mxu0 0.0
    %211 = vmatprep.subr.mxu0 0.0
    %212 = vmatpush1.msra.mxu0 0.0
    %213 = vmatprep.subr.mxu0 0.0
    %214 = vmatpush1.msra.mxu0 0.0
    %215 = vmatprep.subr.mxu0 0.0
    %216 = vmatpush1.msra.mxu0 0.0
    %217 = vmatprep.subr.mxu0 0.0
    %218 = vmatpush1.msra.mxu0 0.0
    %219 = vmatprep.subr.mxu0 0.0
    %220 = vmatpush1.msra.mxu0 0.0
    %221 = vmatprep.subr.mxu0 0.0
    %222 = vmatpush1.msra.mxu0 0.0
    %223 = vmatprep.subr.mxu0 0.0
    %224 = vmatpush1.msra.mxu0 0.0
    %225 = vmatprep.subr.mxu0 0.0
    %226 = vmatpush1.msra.mxu0 0.0
    %227 = vmatprep.subr.mxu0 0.0
    %228 = vmatpush1.msra.mxu0 0.0
    %229 = vmatprep.subr.mxu0 0.0
    %230 = vmatpush1.msra.mxu0 0.0
    %231 = vmatprep.subr.mxu0 0.0
    %232 = vmatpush1.msra.mxu0 0.0
    %233 = vmatprep.subr.mxu0 0.0
    %234 = vmatpush1.msra.mxu0 0.0
    %235 = vmatprep.subr.mxu0 0.0
    %236 = vmatpush1.msra.mxu0 0.0
    %237 = vmatprep.subr.mxu0 0.0
    %238 = vmatpush1.msra.mxu0 0.0
    %239 = vmatprep.subr.mxu0 0.0
    %240 = vmatpush1.msra.mxu0 0.0
    %241 = vmatprep.subr.mxu0 0.0
    %242 = vmatpush1.msra.mxu0 0.0
    %243 = vmatprep.subr.mxu0 0.0
    %244 = vmatpush1.msra.mxu0 0.0
    %245 = vmatprep.subr.mxu0 0.0
    %246 = vmatpush1.msra.mxu0 0.0
    %247 = vmatprep.mubr.f32.mxu0 0.0
    %248 = vmatmul.mubr.f32.gmra.mrb[0].mxu0 %v181
    %v249 = vpop.f32.mrb[0].mxu0
    %v250 = vadd.f32 0.0, %v249
    %v251 = vpop.f32.mrb[0].mxu0
    %252 = vdwg.mxu0
    %v254 = vsel %vm106, %v105, 0
    %256 = vmatprep.subr.mxu0 0.0
    %257 = vmatpush1.msra.mxu0 %v79
    %258 = vmatprep.subr.mxu0 0.0
    %259 = vmatpush1.msra.mxu0 %v80
    %260 = vmatprep.subr.mxu0 0.0
    %261 = vmatpush1.msra.mxu0 %v81
    %262 = vmatprep.subr.mxu0 0.0
    %263 = vmatpush1.msra.mxu0 %v82
    %264 = vmatprep.subr.mxu0 0.0
    %265 = vmatpush1.msra.mxu0 0.0
    %266 = vmatprep.subr.mxu0 0.0
    %267 = vmatpush1.msra.mxu0 0.0
    %268 = vmatprep.subr.mxu0 0.0
    %269 = vmatpush1.msra.mxu0 0.0
    %270 = vmatprep.subr.mxu0 0.0
    %271 = vmatpush1.msra.mxu0 0.0
    %272 = vmatprep.subr.mxu0 0.0
    %273 = vmatpush1.msra.mxu0 0.0
    %274 = vmatprep.subr.mxu0 0.0
    %275 = vmatpush1.msra.mxu0 0.0
    %276 = vmatprep.subr.mxu0 0.0
    %277 = vmatpush1.msra.mxu0 0.0
    %278 = vmatprep.subr.mxu0 0.0
    %279 = vmatpush1.msra.mxu0 0.0
    %280 = vmatprep.subr.mxu0 0.0
    %281 = vmatpush1.msra.mxu0 0.0
    %282 = vmatprep.subr.mxu0 0.0
    %283 = vmatpush1.msra.mxu0 0.0
    %284 = vmatprep.subr.mxu0 0.0
    %285 = vmatpush1.msra.mxu0 0.0
    %286 = vmatprep.subr.mxu0 0.0
    %287 = vmatpush1.msra.mxu0 0.0
    %288 = vmatprep.subr.mxu0 0.0
    %289 = vmatpush1.msra.mxu0 0.0
    %290 = vmatprep.subr.mxu0 0.0
    %291 = vmatpush1.msra.mxu0 0.0
    %292 = vmatprep.subr.mxu0 0.0
    %293 = vmatpush1.msra.mxu0 0.0
    %294 = vmatprep.subr.mxu0 0.0
    %295 = vmatpush1.msra.mxu0 0.0
    %296 = vmatprep.subr.mxu0 0.0
    %297 = vmatpush1.msra.mxu0 0.0
    %298 = vmatprep.subr.mxu0 0.0
    %299 = vmatpush1.msra.mxu0 0.0
    %300 = vmatprep.subr.mxu0 0.0
    %301 = vmatpush1.msra.mxu0 0.0
    %302 = vmatprep.subr.mxu0 0.0
    %303 = vmatpush1.msra.mxu0 0.0
    %304 = vmatprep.subr.mxu0 0.0
    %305 = vmatpush1.msra.mxu0 0.0
    %306 = vmatprep.subr.mxu0 0.0
    %307 = vmatpush1.msra.mxu0 0.0
    %308 = vmatprep.subr.mxu0 0.0
    %309 = vmatpush1.msra.mxu0 0.0
    %310 = vmatprep.subr.mxu0 0.0
    %311 = vmatpush1.msra.mxu0 0.0
    %312 = vmatprep.subr.mxu0 0.0
    %313 = vmatpush1.msra.mxu0 0.0
    %314 = vmatprep.subr.mxu0 0.0
    %315 = vmatpush1.msra.mxu0 0.0
    %316 = vmatprep.subr.mxu0 0.0
    %317 = vmatpush1.msra.mxu0 0.0
    %318 = vmatprep.subr.mxu0 0.0
    %319 = vmatpush1.msra.mxu0 0.0
    %320 = vmatprep.mubr.f32.mxu0 0.0
    %321 = vmatmul.mubr.f32.gmra.mrb[0].mxu0 %v254
    %v322 = vpop.f32.mrb[0].mxu0
    %v323 = vadd.f32 0.0, %v322
    %v324 = vpop.f32.mrb[0].mxu0
    %325 = vdwg.mxu0
    %v326 = vadd.f32 %v177, %v250
    %v327 = vadd.f32 %v177, %v323
    %v328 = vlaneseq
    %v329 = vshrl.u32 %v328, 7
    %v330 = vsub.s32 0, %v329
    %v331 = vrot.slane %v83, %v330
    %v332 = vadd.f32 %v326, %v331
    %v333 = vadd.f32 %v327, %v331
    %v334 = vmax.f32 %v332, 0.0
    %v335 = vmax.f32 %v333, 0.0
    %v336 = vlaneseq
    %v337 = vshrl.u32 %v336, 7
    %v338 = vsub.s32 0, %v337
    %v339 = vrot.slane %v100, %v338
    %340 = vmatprep.subr.mxu0 0.0
    %341 = vmatpush1.msra.mxu0 %v84
    %342 = vmatprep.subr.mxu0 0.0
    %343 = vmatpush1.msra.mxu0 %v85
    %344 = vmatprep.subr.mxu0 0.0
    %345 = vmatpush1.msra.mxu0 %v86
    %346 = vmatprep.subr.mxu0 0.0
    %347 = vmatpush1.msra.mxu0 %v87
    %348 = vmatprep.subr.mxu0 0.0
    %349 = vmatpush1.msra.mxu0 %v88
    %350 = vmatprep.subr.mxu0 0.0
    %351 = vmatpush1.msra.mxu0 %v89
    %352 = vmatprep.subr.mxu0 0.0
    %353 = vmatpush1.msra.mxu0 %v90
    %354 = vmatprep.subr.mxu0 0.0
    %355 = vmatpush1.msra.mxu0 %v91
    %356 = vmatprep.subr.mxu0 0.0
    %357 = vmatpush1.msra.mxu0 %v92
    %358 = vmatprep.subr.mxu0 0.0
    %359 = vmatpush1.msra.mxu0 %v93
    %360 = vmatprep.subr.mxu0 0.0
    %361 = vmatpush1.msra.mxu0 %v94
    %362 = vmatprep.subr.mxu0 0.0
    %363 = vmatpush1.msra.mxu0 %v95
    %364 = vmatprep.subr.mxu0 0.0
    %365 = vmatpush1.msra.mxu0 %v96
    %366 = vmatprep.subr.mxu0 0.0
    %367 = vmatpush1.msra.mxu0 %v97
    %368 = vmatprep.subr.mxu0 0.0
    %369 = vmatpush1.msra.mxu0 %v98
    %370 = vmatprep.subr.mxu0 0.0
    %371 = vmatpush1.msra.mxu0 %v99
    %372 = vmatprep.subr.mxu0 0.0
    %373 = vmatpush1.msra.mxu0 0.0
    %374 = vmatprep.subr.mxu0 0.0
    %375 = vmatpush1.msra.mxu0 0.0
    %376 = vmatprep.subr.mxu0 0.0
    %377 = vmatpush1.msra.mxu0 0.0
    %378 = vmatprep.subr.mxu0 0.0
    %379 = vmatpush1.msra.mxu0 0.0
    %380 = vmatprep.subr.mxu0 0.0
    %381 = vmatpush1.msra.mxu0 0.0
    %382 = vmatprep.subr.mxu0 0.0
    %383 = vmatpush1.msra.mxu0 0.0
    %384 = vmatprep.subr.mxu0 0.0
    %385 = vmatpush1.msra.mxu0 0.0
    %386 = vmatprep.subr.mxu0 0.0
    %387 = vmatpush1.msra.mxu0 0.0
    %388 = vmatprep.subr.mxu0 0.0
    %389 = vmatpush1.msra.mxu0 0.0
    %390 = vmatprep.subr.mxu0 0.0
    %391 = vmatpush1.msra.mxu0 0.0
    %392 = vmatprep.subr.mxu0 0.0
    %393 = vmatpush1.msra.mxu0 0.0
    %394 = vmatprep.subr.mxu0 0.0
    %395 = vmatpush1.msra.mxu0 0.0
    %396 = vmatprep.subr.mxu0 0.0
    %397 = vmatpush1.msra.mxu0 0.0
    %398 = vmatprep.subr.mxu0 0.0
    %399 = vmatpush1.msra.mxu0 0.0
    %400 = vmatprep.subr.mxu0 0.0
    %401 = vmatpush1.msra.mxu0 0.0
    %402 = vmatprep.subr.mxu0 0.0
    %403 = vmatpush1.msra.mxu0 0.0
    %404 = vmatprep.mubr.f32.mxu0 0.0
    %405 = vmatmul.mubr.f32.gmra.mrb[0].mxu0 %v334
    %v406 = vpop.f32.mrb[0].mxu0
    %v407 = vadd.f32 %v339, %v406
    %v408 = vpop.f32.mrb[0].mxu0
    %409 = vmatprep.mubr.f32.mxu0 0.0
    %410 = vmatmul.mubr.f32.gmra.mrb[0].mxu0 %v335
    %v411 = vpop.f32.mrb[0].mxu0
    %v412 = vadd.f32 %v339, %v411
    %v413 = vpop.f32.mrb[0].mxu0
    %414 = vdwg.mxu0
    %v415 = vmax.f32 %v407, 0.0
    %v416 = vmax.f32 %v412, 0.0
    %s417 = smul.u32 0, 8
    %v418 = vlaneseq
    %v419 = vshrl.u32 %v418, 7
    %v420 = vstv %s417
    %v421 = vadd.s32 %v420, %v419
    %vm422 = vcmp.lt.s32.totalorder %v421, 8
    %v423 = vlaneseq
    %v424 = vshrl.u32 %v423, 7
    %v425 = vsub.s32 0, %v424
    %v426 = vrot.slane %v101, %v425
    %v427 = vmul.f32 %v415, %v426
    %v428 = vsel %vm422, 1, 0
    %vm429 = vcmp.eq.s32.totalorder %v428, 1
    %v430 = vsel %vm429, %v427, 0.0
    %431 = vadd.xlane.f32.xlu0 %v430
    %v432 = vpop.xlane.xlu0 %431
    %v433 = vrot.slane %v432, 4
    %v434 = vadd.f32 %v432, %v433
    %v435 = vrot.slane %v434, 2
    %v436 = vadd.f32 %v434, %v435
    %v437 = vrot.slane %v436, 1
    %v438 = vadd.f32 %v436, %v437
    %s439 = vtos %v438
    %v440 = vstv %s439
    %v441 = vld [vmem:[#allocation2] sm:$0x1]
    %v442 = vadd.f32 %v441, %v440
    %vm443 = vcmask 0
    %444 = vst.msk [vmem:[#allocation2] sm:$0x1] %vm443, %v442
    %v445 = vmul.f32 %v416, %v426
    %446 = vadd.xlane.f32.xlu0 %v445
    %v447 = vpop.xlane.xlu0 %446
    %v448 = vsel %vm422, %v447, -inf
    %v449 = vld [vmem:[#allocation3] sm:$0x1]
    %v450 = vrot.slane %v448, 4
    %v451 = vmax.f32 %v448, %v450
    %v452 = vrot.slane %v451, 2
    %v453 = vmax.f32 %v451, %v452
    %v454 = vrot.slane %v453, 1
    %v455 = vmax.f32 %v453, %v454
    %v456 = vmax.f32 %v449, %v455
    %v457 = vld [vmem:[#allocation4] sm:$0x1]
    %v458 = vsub.f32 %v449, %v456
    %v459 = vmul.f32 %v458, 1.442695
    %v460 = vpow.pop %v459
    %v461 = vmul.f32 %v457, %v460
    %v463 = vlaneseq
    %v464 = vshrl.u32 %v463, 7
    %v465 = vsub.s32 0, %v464
    %v466 = vrot.slane %v456, %v465
    %v468 = vsub.f32 %v448, %v466
    %v469 = vmul.f32 %v468, 1.442695
    %v470 = vpow.pop %v469
    %vm471 = vcmask 7168
    %v472 = vsel %vm471, %v470, 0.0
    %v473 = vrot.slane %v472, 4
    %v474 = vadd.f32 %v472, %v473
    %v475 = vrot.slane %v474, 2
    %v476 = vadd.f32 %v474, %v475
    %v477 = vrot.slane %v476, 1
    %v478 = vadd.f32 %v476, %v477
    %v479 = vadd.f32 %v461, %v478
    %480 = vst.msk [vmem:[#allocation4] sm:$0x1] %vm443, %v479
    %481 = vst.msk [vmem:[#allocation3] sm:$0x1] %vm443, %v456
    // Predicated region
    $region38: #{tpu_custom_call.1} parent=1 // pred_check
      %p482 = pneg %p67
    $region39: #{tpu_custom_call.1} parent=1 // pred_check_branch
      %484 = sbr.rel (%p482) target = $region41
    $region40: #{tpu_custom_call.1} parent=1 // pred_region
      %v485 = vld [vmem:[#allocation2] sm:$0x1]
      %v486 = vmul.f32 %v485, 0.125
      %v487 = vld [vmem:[#allocation3] sm:$0x1]
      %v488 = vld [vmem:[#allocation4] sm:$0x1]
      %v489 = vmul.f32 %v488, 0.125
      %v490 = vlog2.pop %v489
      %v491 = vmul.f32 %v490, 0.6931472
      %v492 = vadd.f32 %v487, %v491
      %v493 = vsub.f32 %v486, %v492
      %494 = vst.msk [vmem:[#allocation13] sm:$0x1] %vm443, %v493
    $region41: #{tpu_custom_call.1} parent=1 // pred_fallthru
      _
    // Predicated region
    $region42: #{tpu_custom_call.1} parent=1 // pred_check
      _
    $region43: #{tpu_custom_call.1} parent=1 // pred_check_branch
      %496 = sbr.rel (0) target = $region45
    $region44: #{tpu_custom_call.1} parent=1 // pred_region
      %s498 = ssub.s32 16, 16
      %499 = vsyncadd [#allocation7], %s498
      %s501 = sshll.u32 [#allocation13], 4
      %s502 = int_to_ptr.vmem [resolvable:$true] %s501
      %504 = dma.vmem_to_hbm [thread:$0]  %s502, 16, %s4, [#allocation7]
    $region45: #{tpu_custom_call.1} parent=1 // pred_fallthru
      _
    // Predicated region
    $region46: #{tpu_custom_call.1} parent=1 // pred_check
      _
    $region47: #{tpu_custom_call.1} parent=1 // pred_check_branch
      %506 = sbr.rel (0) target = $region49
    $region48: #{tpu_custom_call.1} parent=1 // pred_region
      %507 = dma.done [#allocation7], 16
    $region49: #{tpu_custom_call.1} parent=1 // pred_fallthru
      _
    %508 = vsyncpa [#allocation6], 1
    %509 = vsyncpa [#allocation9], 1
    %510 = vsyncpa [#allocation12], 1
    %511 = vsyncpa [#allocation7], 1

</llo_original>
